<compile_context>
chip_gen: v7x
topology: tpu7x:2x2x1
jax: 0.10.0
libtpu: 0.0.40
codegen_flags: <defaults>
</compile_context>

<pallas_src>
import jax
import jax.numpy as jnp
from jax.experimental import pallas as pl
from jax.experimental.pallas import tpu as pltpu

LIDAR_NO = 5
N_ACTIONS = 5
HIDDEN = 20

# Packed-parameter buffer layout (rows x cols). Each layer occupies an
# 8-aligned row block; columns 0:in_features hold W, column `in_features`
# holds the bias.
_R1, _R2, _R3 = 0, 24, 48          # 8-aligned row starts for layers 1/2/3
_PK_ROWS = 56                      # multiple of 8 (sublane)
_PK_COLS = 32                      # >= HIDDEN + 1


def _round_up(n, m):
    return ((n + m - 1) // m) * m


def _mlp_kernel(pk_ref, x_ref, o_ref):
    """Whole forward pass for one batch tile.

    pk_ref : (56, 32)  packed weights+biases, resident across grid steps
    x_ref  : (5,  TB)  input tile, batch on lanes
    o_ref  : (5,  TB)  output tile, batch on lanes (unmasked lane-dense stores)
    """
    x = x_ref[...]                                                  # (5, TB)

    w1 = pk_ref[_R1:_R1 + HIDDEN, :LIDAR_NO]                        # (20, 5)
    b1 = pk_ref[_R1:_R1 + HIDDEN, LIDAR_NO:LIDAR_NO + 1]            # (20, 1)
    w2 = pk_ref[_R2:_R2 + HIDDEN, :HIDDEN]                          # (20, 20)
    b2 = pk_ref[_R2:_R2 + HIDDEN, HIDDEN:HIDDEN + 1]                # (20, 1)
    w3 = pk_ref[_R3:_R3 + N_ACTIONS, :HIDDEN]                       # (5, 20)
    b3 = pk_ref[_R3:_R3 + N_ACTIONS, HIDDEN:HIDDEN + 1]             # (5, 1)

    h1 = jnp.dot(w1, x, preferred_element_type=jnp.float32)
    h1 = jnp.maximum(h1 + b1, 0.0)                                  # (20, TB)

    h2 = jnp.dot(w2, h1, preferred_element_type=jnp.float32)
    h2 = jnp.maximum(h2 + b2, 0.0)                                  # (20, TB)

    out = jnp.dot(w3, h2, preferred_element_type=jnp.float32) + b3  # (5, TB)
    o_ref[...] = out.astype(o_ref.dtype)


def pack_params(params):
    """Pack all weights/biases (PyTorch (out,in) layout) into one f32 buffer."""
    pk = jnp.zeros((_PK_ROWS, _PK_COLS), jnp.float32)
    pk = pk.at[_R1:_R1 + HIDDEN, :LIDAR_NO].set(params["w1"])
    pk = pk.at[_R1:_R1 + HIDDEN, LIDAR_NO:LIDAR_NO + 1].set(params["b1"][:, None])
    pk = pk.at[_R2:_R2 + HIDDEN, :HIDDEN].set(params["w2"])
    pk = pk.at[_R2:_R2 + HIDDEN, HIDDEN:HIDDEN + 1].set(params["b2"][:, None])
    pk = pk.at[_R3:_R3 + N_ACTIONS, :HIDDEN].set(params["w3"])
    pk = pk.at[_R3:_R3 + N_ACTIONS, HIDDEN:HIDDEN + 1].set(params["b3"][:, None])
    return pk


def net_forward(x, packed, *, max_tile=512):
    """x: (B, LIDAR_NO) float32; packed: pack_params(...) output.

    Returns (B, N_ACTIONS) float32, matching Net.forward semantics.
    """
    B = x.shape[0]
    xt = x.astype(jnp.float32).T                       # (5, B) batch-on-lanes

    tb = min(max_tile, _round_up(B, 128))              # lane-multiple tile
    Bp = _round_up(B, tb)
    if Bp != B:
        xt = jnp.pad(xt, ((0, 0), (0, Bp - B)))

    out_t = pl.pallas_call(
        _mlp_kernel,
        out_shape=jax.ShapeDtypeStruct((N_ACTIONS, Bp), jnp.float32),
        grid=(Bp // tb,),
        in_specs=[
            # Packed weights: constant index_map -> resident across grid steps.
            pl.BlockSpec((_PK_ROWS, _PK_COLS), lambda i: (0, 0)),
            # Input tile: batch on the lane axis.
            pl.BlockSpec((LIDAR_NO, tb), lambda i: (0, i)),
        ],
        out_specs=pl.BlockSpec((N_ACTIONS, tb), lambda i: (0, i)),
        compiler_params=pltpu.CompilerParams(
            dimension_semantics=("parallel",),          # megacore shard on v7x
            vmem_limit_bytes=16 * 1024 * 1024,          # fits v5e scoped default
        ),
    )(packed, xt)

    return out_t[:, :B].T                              # back to (B, N_ACTIONS)


def init_params(key):
    """Mirror Net.__init__: weights ~ N(0, 0.1) via .normal_(0, 0.1);
    biases keep the PyTorch nn.Linear default U(-1/sqrt(fan_in), 1/sqrt(fan_in)).
    Weights are stored in PyTorch (out_features, in_features) layout.
    """
    ks = jax.random.split(key, 6)

    def w(k, fan_out, fan_in):
        return (0.1 * jax.random.normal(k, (fan_out, fan_in))).astype(jnp.float32)

    def b(k, fan_in, fan_out):
        bound = 1.0 / jnp.sqrt(float(fan_in))
        return jax.random.uniform(k, (fan_out,), minval=-bound,
                                  maxval=bound).astype(jnp.float32)

    return {
        "w1": w(ks[0], HIDDEN, LIDAR_NO),    "b1": b(ks[1], LIDAR_NO, HIDDEN),
        "w2": w(ks[2], HIDDEN, HIDDEN),      "b2": b(ks[3], HIDDEN, HIDDEN),
        "w3": w(ks[4], N_ACTIONS, HIDDEN),   "b3": b(ks[5], HIDDEN, N_ACTIONS),
    }


def _reference(x, p):
    h1 = jnp.maximum(x @ p["w1"].T + p["b1"], 0.0)
    h2 = jnp.maximum(h1 @ p["w2"].T + p["b2"], 0.0)
    return h2 @ p["w3"].T + p["b3"]


if __name__ == "__main__":
    key = jax.random.PRNGKey(0)
    pkey, xkey = jax.random.split(key)

    params = init_params(pkey)
    packed = pack_params(params)                       # pack once, reuse per call

    batch = 8
    x = jax.random.normal(xkey, (batch, LIDAR_NO), dtype=jnp.float32)

    out = net_forward(x, packed)
    out = jax.block_until_ready(out)

    ref = _reference(x, params)
    assert out.shape == (batch, N_ACTIONS)
    assert jnp.allclose(out, ref, atol=1e-5, rtol=1e-5)

    print("KERNEL_OK")
</pallas_src>

<mosaic_0001>
module attributes {stable_mosaic.version = 11 : i64} {
  func.func @_mlp_kernel(%arg0: i32, %arg1: memref<56x32xf32, #tpu.memory_space<vmem>>, %arg2: memref<5x128xf32, #tpu.memory_space<vmem>>, %arg3: memref<5x128xf32, #tpu.memory_space<vmem>>) attributes {dimension_semantics = [#tpu.dimension_semantics<parallel>], iteration_bounds = array<i64: 1>, scalar_prefetch = 0 : i64, scratch_operands = 0 : i64, tpu.core_type = #tpu.core_type<tc>, window_params = [{pipeline_mode = #tpu.pipeline_mode<synchronous>, transform_indices = @transform_0, window_bounds = array<i64: 56, 32>}, {transform_indices = @transform_1, window_bounds = array<i64: 5, 128>}, {transform_indices = @transform_2, window_bounds = array<i64: 5, 128>}]} {
    %c0 = arith.constant 0 : index
    %c0_0 = arith.constant 0 : index
    %0 = vector.load %arg2[%c0, %c0_0] : memref<5x128xf32, #tpu.memory_space<vmem>>, vector<5x128xf32>
    %c0_1 = arith.constant 0 : index
    %c0_2 = arith.constant 0 : index
    %1 = vector.load %arg1[%c0_1, %c0_2] : memref<56x32xf32, #tpu.memory_space<vmem>>, vector<20x5xf32>
    %c0_3 = arith.constant 0 : index
    %c5 = arith.constant 5 : index
    %2 = vector.load %arg1[%c0_3, %c5] : memref<56x32xf32, #tpu.memory_space<vmem>>, vector<20x1xf32>
    %c24 = arith.constant 24 : index
    %c0_4 = arith.constant 0 : index
    %3 = vector.load %arg1[%c24, %c0_4] : memref<56x32xf32, #tpu.memory_space<vmem>>, vector<20x20xf32>
    %c24_5 = arith.constant 24 : index
    %c20 = arith.constant 20 : index
    %4 = vector.load %arg1[%c24_5, %c20] : memref<56x32xf32, #tpu.memory_space<vmem>>, vector<20x1xf32>
    %c48 = arith.constant 48 : index
    %c0_6 = arith.constant 0 : index
    %5 = vector.load %arg1[%c48, %c0_6] : memref<56x32xf32, #tpu.memory_space<vmem>>, vector<5x20xf32>
    %c48_7 = arith.constant 48 : index
    %c20_8 = arith.constant 20 : index
    %6 = vector.load %arg1[%c48_7, %c20_8] : memref<56x32xf32, #tpu.memory_space<vmem>>, vector<5x1xf32>
    %cst = arith.constant dense<0.000000e+00> : vector<20x128xf32>
    %7 = tpu.matmul %1, %0, %cst {dimension_numbers = #tpu.dot_dimension_numbers<[1], [0], [0], [1], [0, 0, 1, 1], [], []>} : vector<20x5xf32>, vector<5x128xf32>, vector<20x128xf32> -> vector<20x128xf32>
    %8 = vector.broadcast %2 : vector<20x1xf32> to vector<20x128xf32>
    %9 = arith.addf %7, %8 : vector<20x128xf32>
    %cst_9 = arith.constant 0.000000e+00 : f32
    %10 = vector.broadcast %cst_9 : f32 to vector<20x128xf32>
    %11 = arith.maximumf %9, %10 : vector<20x128xf32>
    %cst_10 = arith.constant dense<0.000000e+00> : vector<20x128xf32>
    %12 = tpu.matmul %3, %11, %cst_10 {dimension_numbers = #tpu.dot_dimension_numbers<[1], [0], [0], [1], [0, 0, 1, 1], [], []>} : vector<20x20xf32>, vector<20x128xf32>, vector<20x128xf32> -> vector<20x128xf32>
    %13 = vector.broadcast %4 : vector<20x1xf32> to vector<20x128xf32>
    %14 = arith.addf %12, %13 : vector<20x128xf32>
    %cst_11 = arith.constant 0.000000e+00 : f32
    %15 = vector.broadcast %cst_11 : f32 to vector<20x128xf32>
    %16 = arith.maximumf %14, %15 : vector<20x128xf32>
    %cst_12 = arith.constant dense<0.000000e+00> : vector<5x128xf32>
    %17 = tpu.matmul %5, %16, %cst_12 {dimension_numbers = #tpu.dot_dimension_numbers<[1], [0], [0], [1], [0, 0, 1, 1], [], []>} : vector<5x20xf32>, vector<20x128xf32>, vector<5x128xf32> -> vector<5x128xf32>
    %18 = vector.broadcast %6 : vector<5x1xf32> to vector<5x128xf32>
    %19 = arith.addf %17, %18 : vector<5x128xf32>
    %c0_13 = arith.constant 0 : index
    %c0_14 = arith.constant 0 : index
    %20 = vector.load %arg3[%c0_13, %c0_14] : memref<5x128xf32, #tpu.memory_space<vmem>>, vector<5x128xf32>
    tpu.vector_store %arg3[%c0_13, %c0_14], %19 {strides = array<i32>} : memref<5x128xf32, #tpu.memory_space<vmem>>, vector<5x128xf32>,
    return
  }
  func.func @transform_0(%arg0: i32) -> (i32, i32) {
    %c0_i32 = arith.constant 0 : i32
    %c0_i32_0 = arith.constant 0 : i32
    %c0_i32_1 = arith.constant 0 : i32
    return %c0_i32, %c0_i32_0 : i32, i32
  }
  func.func @transform_1(%arg0: i32) -> (i32, i32) {
    %c0_i32 = arith.constant 0 : i32
    %c0_i32_0 = arith.constant 0 : i32
    return %c0_i32, %arg0 : i32, i32
  }
  func.func @transform_2(%arg0: i32) -> (i32, i32) {
    %c0_i32 = arith.constant 0 : i32
    %c0_i32_0 = arith.constant 0 : i32
    return %c0_i32, %arg0 : i32, i32
  }
}

</mosaic_0001>

<llo_original>
// kernel: tpu_custom_call.1
$region0: #{tpu_custom_call.1}
  #allocation0 [shape = 'u32[]', space=smem, size = 0x4, offset = 0x4, fixed_abs, tag = 'smem constant byte address 0x4 - core index']
  #allocation1 [shape = 'u32[144,128]{1,0:T(1,128)}', space=vmem, size = 0x12000, scoped, tag = 'internal scratch']
  %s0 = inlined_call_operand.vmem [shape: f32[56,32], index: 0, kind: input, shape index: {}]
  %s1 = inlined_call_operand.vmem [shape: f32[5,128], index: 1, kind: input, shape index: {}]
  %s2 = inlined_call_operand.hbm [shape: f32[5,128], index: 2, kind: output, shape index: {}]
  %s3 = sld [smem:[#allocation0]]
  $region18: #{tpu_custom_call.1} parent=0
    _
  %s5 = ssub.s32 1, %s3
  %s6 = scalar_select 0, %s5, %s3
  $region1: #{tpu_custom_call.1} parent=0
    #allocation2 [shape = 'u8[4096]{0}', space=vmem, size = 0x1000, scoped, tag = 'output window, operand 0, single buffered']
    #allocation3 [shape = 's32[1]{0}', space=sflag, size = 0x4, scoped, tag = 'scoped memory for tpu_custom_call.1']
    %7 = vsyncpa [#allocation3], 0
    // Predicated region
    $region2: #{tpu_custom_call.1} parent=1 // pred_check
      _
    $region3: #{tpu_custom_call.1} parent=1 // pred_check_branch
      %9 = sbr.rel (0) target = $region5
    $region4: #{tpu_custom_call.1} parent=1 // pred_region
      _
    $region5: #{tpu_custom_call.1} parent=1 // pred_fallthru
      _
    // Predicated region
    $region6: #{tpu_custom_call.1} parent=1 // pred_check
      _
    $region7: #{tpu_custom_call.1} parent=1 // pred_check_branch
      %11 = sbr.rel (0) target = $region9
    $region8: #{tpu_custom_call.1} parent=1 // pred_region
      _
    $region9: #{tpu_custom_call.1} parent=1 // pred_fallthru
      _
    %v12 = vld [vmem:[%s1] sm:$0x1f]
    %v13 = vld [vmem:[%s0] sm:$0xff]
    %v14 = vld [vmem:[%s0 + $0x8] sm:$0xff]
    %v15 = vld [vmem:[%s0 + $0x10] sm:$0xf]
    %v16 = vld [vmem:[%s0 + $0x18] sm:$0xff]
    %v17 = vld [vmem:[%s0 + $0x20] sm:$0xff]
    %v18 = vld [vmem:[%s0 + $0x28] sm:$0xf]
    %v19 = vld [vmem:[%s0 + $0x30] sm:$0x1f]
    %21 = vset.pattern.permute.xlu0 5
    %22 = vperm.xlu0 %21, %v13
    %v23 = vpop.permute.xlu0 %22
    %26 = vset.pattern.permute.xlu0 5
    %27 = vperm.xlu0 %26, %v14
    %v28 = vpop.permute.xlu0 %27
    %31 = vset.pattern.permute.xlu0 5
    %32 = vperm.xlu0 %31, %v15
    %v33 = vpop.permute.xlu0 %32
    %vm35 = vcmask 39936
    %v36 = vsel %vm35, %v13, 0
    %v38 = vsel %vm35, %v14, 0
    %v40 = vsel %vm35, %v15, 0
    %vm42 = vcmask 1044480
    %v44 = vsel %vm42, %v12, 0
    %46 = vmatprep.subr.mxu0 0.0
    %47 = vmatpush1.msra.mxu0 %v44
    %48 = vmatprep.subr.mxu0 0.0
    %49 = vmatpush1.msra.mxu0 0.0
    %50 = vmatprep.subr.mxu0 0.0
    %51 = vmatpush1.msra.mxu0 0.0
    %52 = vmatprep.subr.mxu0 0.0
    %53 = vmatpush1.msra.mxu0 0.0
    %54 = vmatprep.subr.mxu0 0.0
    %55 = vmatpush1.msra.mxu0 0.0
    %56 = vmatprep.subr.mxu0 0.0
    %57 = vmatpush1.msra.mxu0 0.0
    %58 = vmatprep.subr.mxu0 0.0
    %59 = vmatpush1.msra.mxu0 0.0
    %60 = vmatprep.subr.mxu0 0.0
    %61 = vmatpush1.msra.mxu0 0.0
    %62 = vmatprep.subr.mxu0 0.0
    %63 = vmatpush1.msra.mxu0 0.0
    %64 = vmatprep.subr.mxu0 0.0
    %65 = vmatpush1.msra.mxu0 0.0
    %66 = vmatprep.subr.mxu0 0.0
    %67 = vmatpush1.msra.mxu0 0.0
    %68 = vmatprep.subr.mxu0 0.0
    %69 = vmatpush1.msra.mxu0 0.0
    %70 = vmatprep.subr.mxu0 0.0
    %71 = vmatpush1.msra.mxu0 0.0
    %72 = vmatprep.subr.mxu0 0.0
    %73 = vmatpush1.msra.mxu0 0.0
    %74 = vmatprep.subr.mxu0 0.0
    %75 = vmatpush1.msra.mxu0 0.0
    %76 = vmatprep.subr.mxu0 0.0
    %77 = vmatpush1.msra.mxu0 0.0
    %78 = vmatprep.subr.mxu0 0.0
    %79 = vmatpush1.msra.mxu0 0.0
    %80 = vmatprep.subr.mxu0 0.0
    %81 = vmatpush1.msra.mxu0 0.0
    %82 = vmatprep.subr.mxu0 0.0
    %83 = vmatpush1.msra.mxu0 0.0
    %84 = vmatprep.subr.mxu0 0.0
    %85 = vmatpush1.msra.mxu0 0.0
    %86 = vmatprep.subr.mxu0 0.0
    %87 = vmatpush1.msra.mxu0 0.0
    %88 = vmatprep.subr.mxu0 0.0
    %89 = vmatpush1.msra.mxu0 0.0
    %90 = vmatprep.subr.mxu0 0.0
    %91 = vmatpush1.msra.mxu0 0.0
    %92 = vmatprep.subr.mxu0 0.0
    %93 = vmatpush1.msra.mxu0 0.0
    %94 = vmatprep.subr.mxu0 0.0
    %95 = vmatpush1.msra.mxu0 0.0
    %96 = vmatprep.subr.mxu0 0.0
    %97 = vmatpush1.msra.mxu0 0.0
    %98 = vmatprep.subr.mxu0 0.0
    %99 = vmatpush1.msra.mxu0 0.0
    %100 = vmatprep.subr.mxu0 0.0
    %101 = vmatpush1.msra.mxu0 0.0
    %102 = vmatprep.subr.mxu0 0.0
    %103 = vmatpush1.msra.mxu0 0.0
    %104 = vmatprep.subr.mxu0 0.0
    %105 = vmatpush1.msra.mxu0 0.0
    %106 = vmatprep.subr.mxu0 0.0
    %107 = vmatpush1.msra.mxu0 0.0
    %108 = vmatprep.subr.mxu0 0.0
    %109 = vmatpush1.msra.mxu0 0.0
    %110 = vmatprep.mubr.f32.mxu0 0.0
    %111 = vmatmul.mubr.f32.gmra.mrb[0].mxu0 %v36
    %v112 = vpop.f32.mrb[0].mxu0
    %v113 = vadd.f32 %v23, %v112
    %v114 = vpop.f32.mrb[0].mxu0
    %115 = vmatprep.mubr.f32.mxu0 0.0
    %116 = vmatmul.mubr.f32.gmra.mrb[0].mxu0 %v38
    %v117 = vpop.f32.mrb[0].mxu0
    %v118 = vadd.f32 %v28, %v117
    %v119 = vpop.f32.mrb[0].mxu0
    %120 = vmatprep.mubr.f32.mxu0 0.0
    %121 = vmatmul.mubr.f32.gmra.mrb[0].mxu0 %v40
    %v122 = vpop.f32.mrb[0].mxu0
    %v123 = vadd.f32 %v33, %v122
    %v124 = vpop.f32.mrb[0].mxu0
    %125 = vdwg.mxu0
    %v126 = vmax.f32 %v113, 0.0
    %v127 = vmax.f32 %v118, 0.0
    %v128 = vmax.f32 %v123, 0.0
    %130 = vset.pattern.permute.xlu0 20
    %131 = vperm.xlu0 %130, %v16
    %v132 = vpop.permute.xlu0 %131
    %135 = vset.pattern.permute.xlu0 20
    %136 = vperm.xlu0 %135, %v17
    %v137 = vpop.permute.xlu0 %136
    %140 = vset.pattern.permute.xlu0 20
    %141 = vperm.xlu0 %140, %v18
    %v142 = vpop.permute.xlu0 %141
    %vm144 = vcmask 162816
    %v145 = vsel %vm144, %v16, 0
    %v147 = vsel %vm144, %v17, 0
    %v149 = vsel %vm144, %v18, 0
    %vm151 = vcmask 1043456
    %v153 = vsel %vm151, %v128, 0
    %155 = vmatprep.subr.mxu0 0.0
    %156 = vmatpush1.msra.mxu0 %v126
    %157 = vmatprep.subr.mxu0 0.0
    %158 = vmatpush1.msra.mxu0 %v127
    %159 = vmatprep.subr.mxu0 0.0
    %160 = vmatpush1.msra.mxu0 %v153
    %161 = vmatprep.subr.mxu0 0.0
    %162 = vmatpush1.msra.mxu0 0.0
    %163 = vmatprep.subr.mxu0 0.0
    %164 = vmatpush1.msra.mxu0 0.0
    %165 = vmatprep.subr.mxu0 0.0
    %166 = vmatpush1.msra.mxu0 0.0
    %167 = vmatprep.subr.mxu0 0.0
    %168 = vmatpush1.msra.mxu0 0.0
    %169 = vmatprep.subr.mxu0 0.0
    %170 = vmatpush1.msra.mxu0 0.0
    %171 = vmatprep.subr.mxu0 0.0
    %172 = vmatpush1.msra.mxu0 0.0
    %173 = vmatprep.subr.mxu0 0.0
    %174 = vmatpush1.msra.mxu0 0.0
    %175 = vmatprep.subr.mxu0 0.0
    %176 = vmatpush1.msra.mxu0 0.0
    %177 = vmatprep.subr.mxu0 0.0
    %178 = vmatpush1.msra.mxu0 0.0
    %179 = vmatprep.subr.mxu0 0.0
    %180 = vmatpush1.msra.mxu0 0.0
    %181 = vmatprep.subr.mxu0 0.0
    %182 = vmatpush1.msra.mxu0 0.0
    %183 = vmatprep.subr.mxu0 0.0
    %184 = vmatpush1.msra.mxu0 0.0
    %185 = vmatprep.subr.mxu0 0.0
    %186 = vmatpush1.msra.mxu0 0.0
    %187 = vmatprep.subr.mxu0 0.0
    %188 = vmatpush1.msra.mxu0 0.0
    %189 = vmatprep.subr.mxu0 0.0
    %190 = vmatpush1.msra.mxu0 0.0
    %191 = vmatprep.subr.mxu0 0.0
    %192 = vmatpush1.msra.mxu0 0.0
    %193 = vmatprep.subr.mxu0 0.0
    %194 = vmatpush1.msra.mxu0 0.0
    %195 = vmatprep.subr.mxu0 0.0
    %196 = vmatpush1.msra.mxu0 0.0
    %197 = vmatprep.subr.mxu0 0.0
    %198 = vmatpush1.msra.mxu0 0.0
    %199 = vmatprep.subr.mxu0 0.0
    %200 = vmatpush1.msra.mxu0 0.0
    %201 = vmatprep.subr.mxu0 0.0
    %202 = vmatpush1.msra.mxu0 0.0
    %203 = vmatprep.subr.mxu0 0.0
    %204 = vmatpush1.msra.mxu0 0.0
    %205 = vmatprep.subr.mxu0 0.0
    %206 = vmatpush1.msra.mxu0 0.0
    %207 = vmatprep.subr.mxu0 0.0
    %208 = vmatpush1.msra.mxu0 0.0
    %209 = vmatprep.subr.mxu0 0.0
    %210 = vmatpush1.msra.mxu0 0.0
    %211 = vmatprep.subr.mxu0 0.0
    %212 = vmatpush1.msra.mxu0 0.0
    %213 = vmatprep.subr.mxu0 0.0
    %214 = vmatpush1.msra.mxu0 0.0
    %215 = vmatprep.subr.mxu0 0.0
    %216 = vmatpush1.msra.mxu0 0.0
    %217 = vmatprep.subr.mxu0 0.0
    %218 = vmatpush1.msra.mxu0 0.0
    %219 = vmatprep.mubr.f32.mxu0 0.0
    %220 = vmatmul.mubr.f32.gmra.mrb[0].mxu0 %v145
    %v221 = vpop.f32.mrb[0].mxu0
    %v222 = vadd.f32 %v132, %v221
    %v223 = vpop.f32.mrb[0].mxu0
    %224 = vmatprep.mubr.f32.mxu0 0.0
    %225 = vmatmul.mubr.f32.gmra.mrb[0].mxu0 %v147
    %v226 = vpop.f32.mrb[0].mxu0
    %v227 = vadd.f32 %v137, %v226
    %v228 = vpop.f32.mrb[0].mxu0
    %229 = vmatprep.mubr.f32.mxu0 0.0
    %230 = vmatmul.mubr.f32.gmra.mrb[0].mxu0 %v149
    %v231 = vpop.f32.mrb[0].mxu0
    %v232 = vadd.f32 %v142, %v231
    %v233 = vpop.f32.mrb[0].mxu0
    %234 = vdwg.mxu0
    %v235 = vmax.f32 %v222, 0.0
    %v236 = vmax.f32 %v227, 0.0
    %v237 = vmax.f32 %v232, 0.0
    %239 = vset.pattern.permute.xlu0 20
    %240 = vperm.xlu0 %239, %v19
    %v241 = vpop.permute.xlu0 %240
    %v243 = vsel %vm144, %v19, 0
    %v246 = vsel %vm151, %v237, 0
    %248 = vmatprep.subr.mxu0 0.0
    %249 = vmatpush1.msra.mxu0 %v235
    %250 = vmatprep.subr.mxu0 0.0
    %251 = vmatpush1.msra.mxu0 %v236
    %252 = vmatprep.subr.mxu0 0.0
    %253 = vmatpush1.msra.mxu0 %v246
    %254 = vmatprep.subr.mxu0 0.0
    %255 = vmatpush1.msra.mxu0 0.0
    %256 = vmatprep.subr.mxu0 0.0
    %257 = vmatpush1.msra.mxu0 0.0
    %258 = vmatprep.subr.mxu0 0.0
    %259 = vmatpush1.msra.mxu0 0.0
    %260 = vmatprep.subr.mxu0 0.0
    %261 = vmatpush1.msra.mxu0 0.0
    %262 = vmatprep.subr.mxu0 0.0
    %263 = vmatpush1.msra.mxu0 0.0
    %264 = vmatprep.subr.mxu0 0.0
    %265 = vmatpush1.msra.mxu0 0.0
    %266 = vmatprep.subr.mxu0 0.0
    %267 = vmatpush1.msra.mxu0 0.0
    %268 = vmatprep.subr.mxu0 0.0
    %269 = vmatpush1.msra.mxu0 0.0
    %270 = vmatprep.subr.mxu0 0.0
    %271 = vmatpush1.msra.mxu0 0.0
    %272 = vmatprep.subr.mxu0 0.0
    %273 = vmatpush1.msra.mxu0 0.0
    %274 = vmatprep.subr.mxu0 0.0
    %275 = vmatpush1.msra.mxu0 0.0
    %276 = vmatprep.subr.mxu0 0.0
    %277 = vmatpush1.msra.mxu0 0.0
    %278 = vmatprep.subr.mxu0 0.0
    %279 = vmatpush1.msra.mxu0 0.0
    %280 = vmatprep.subr.mxu0 0.0
    %281 = vmatpush1.msra.mxu0 0.0
    %282 = vmatprep.subr.mxu0 0.0
    %283 = vmatpush1.msra.mxu0 0.0
    %284 = vmatprep.subr.mxu0 0.0
    %285 = vmatpush1.msra.mxu0 0.0
    %286 = vmatprep.subr.mxu0 0.0
    %287 = vmatpush1.msra.mxu0 0.0
    %288 = vmatprep.subr.mxu0 0.0
    %289 = vmatpush1.msra.mxu0 0.0
    %290 = vmatprep.subr.mxu0 0.0
    %291 = vmatpush1.msra.mxu0 0.0
    %292 = vmatprep.subr.mxu0 0.0
    %293 = vmatpush1.msra.mxu0 0.0
    %294 = vmatprep.subr.mxu0 0.0
    %295 = vmatpush1.msra.mxu0 0.0
    %296 = vmatprep.subr.mxu0 0.0
    %297 = vmatpush1.msra.mxu0 0.0
    %298 = vmatprep.subr.mxu0 0.0
    %299 = vmatpush1.msra.mxu0 0.0
    %300 = vmatprep.subr.mxu0 0.0
    %301 = vmatpush1.msra.mxu0 0.0
    %302 = vmatprep.subr.mxu0 0.0
    %303 = vmatpush1.msra.mxu0 0.0
    %304 = vmatprep.subr.mxu0 0.0
    %305 = vmatpush1.msra.mxu0 0.0
    %306 = vmatprep.subr.mxu0 0.0
    %307 = vmatpush1.msra.mxu0 0.0
    %308 = vmatprep.subr.mxu0 0.0
    %309 = vmatpush1.msra.mxu0 0.0
    %310 = vmatprep.subr.mxu0 0.0
    %311 = vmatpush1.msra.mxu0 0.0
    %312 = vmatprep.mubr.f32.mxu0 0.0
    %313 = vmatmul.mubr.f32.gmra.mrb[0].mxu0 %v243
    %v314 = vpop.f32.mrb[0].mxu0
    %v315 = vadd.f32 %v241, %v314
    %v316 = vpop.f32.mrb[0].mxu0
    %317 = vdwg.mxu0
    %318 = vst [vmem:[#allocation2] sm:$0x1f] %v315
    // Predicated region
    $region10: #{tpu_custom_call.1} parent=1 // pred_check
      _
    $region11: #{tpu_custom_call.1} parent=1 // pred_check_branch
      %320 = sbr.rel (0) target = $region13
    $region12: #{tpu_custom_call.1} parent=1 // pred_region
      %s322 = ssub.s32 128, 128
      %323 = vsyncadd [#allocation3], %s322
      %s325 = sshll.u32 [#allocation2], 4
      %s326 = int_to_ptr.vmem [resolvable:$true] %s325
      %328 = dma.vmem_to_hbm [thread:$0]  %s326, 128, %s2, [#allocation3]
    $region13: #{tpu_custom_call.1} parent=1 // pred_fallthru
      _
    // Predicated region
    $region14: #{tpu_custom_call.1} parent=1 // pred_check
      _
    $region15: #{tpu_custom_call.1} parent=1 // pred_check_branch
      %330 = sbr.rel (0) target = $region17
    $region16: #{tpu_custom_call.1} parent=1 // pred_region
      %331 = dma.done [#allocation3], 128
    $region17: #{tpu_custom_call.1} parent=1 // pred_fallthru
      _
    %332 = vsyncpa [#allocation3], 1

</llo_original>
